<compile_context>
chip_gen: v5e
topology: v5e:2x2
jax: 0.10.0
libtpu: 0.0.40
codegen_flags: <defaults>
</compile_context>

<pallas_src>
import jax
import jax.numpy as jnp
from jax.experimental import pallas as pl
from jax.experimental.pallas import tpu as pltpu


def scse_kernel(x_ref, params_ref, b1_ref, o_ref):
    # x_ref block: (1, C, HW) — C on sublanes, HW (lane-dense) on lanes.
    x = x_ref[0]                                       # (C, HW) f32
    _, hw = x.shape

    p = params_ref[...]                                # (C, 2R+2) packed params
    r = (p.shape[1] - 2) // 2
    w1 = p[:, 0:r]                                     # (C, R)  fc1 weight^T
    w2 = p[:, r:2 * r]                                 # (C, R)  fc2 weight (out=C, in=R)
    b2 = p[:, 2 * r:2 * r + 1]                         # (C, 1)  fc2 bias
    w_spa = p[:, 2 * r + 1:2 * r + 2]                  # (C, 1)  1x1-conv weight

    # ---- channel SE: global average pool (lane reduce) -> tiny MLP -> sigmoid ----
    mean_c = jnp.sum(x, axis=1, keepdims=True) * (1.0 / hw)                   # (C, 1)
    h = jnp.maximum(
        jnp.sum(w1 * mean_c, axis=0, keepdims=True) + b1_ref[...], 0.0)       # (1, R)
    gate_c = jax.nn.sigmoid(
        jnp.sum(w2 * h, axis=1, keepdims=True) + b2)                          # (C, 1)

    # ---- spatial SE: 1x1 conv as VPU mul + sublane reduce -> sigmoid ----
    spa = jax.nn.sigmoid(jnp.sum(x * w_spa, axis=0, keepdims=True))           # (1, HW)

    # ---- fused combine: x*gc + x*gs == x*(gc + gs) ----
    o_ref[0] = x * (gate_c + spa)


def scse_block(x_nchw, w1, b1, w2, b2, w_spa):
    """x_nchw: (B, C, H, W) float32.
       Param layouts (kernel-friendly, all derived from the PyTorch module):
         w1:    (C, R)  = Linear(C, R).weight.T
         b1:    (1, R)  = Linear(C, R).bias
         w2:    (C, R)  = Linear(R, C).weight        (NOT transposed)
         b2:    (C, 1)  = Linear(R, C).bias
         w_spa: (C, 1)  = Conv2d(C, 1, 1).weight reshaped
    """
    B, C, H, W = x_nchw.shape
    HW = H * W
    R = w1.shape[1]

    # NCHW-native: only collapse spatial dims (no transpose, no extra HBM pass).
    x = x_nchw.reshape(B, C, HW)

    # Pack the tiny per-channel params into one slab: [w1 | w2 | b2 | w_spa].
    params = jnp.concatenate([w1, w2, b2, w_spa], axis=1)          # (C, 2R+2)

    # Per-batch block (double-buffered in + out) must fit comfortably in VMEM.
    # TODO(synk): for very large C*H*W (multi-MiB blocks, esp. v7x's 64 MiB VMEM)
    # tile HW with a two-phase grid (accumulate mean, then apply gates).
    assert 4 * C * HW * 4 < 48 * 1024 * 1024, "per-batch block too large; tile HW"

    out = pl.pallas_call(
        scse_kernel,
        out_shape=jax.ShapeDtypeStruct((B, C, HW), jnp.float32),
        grid_spec=pltpu.PrefetchScalarGridSpec(
            num_scalar_prefetch=0,
            grid=(B,),
            in_specs=[
                pl.BlockSpec((1, C, HW), lambda b: (b, 0, 0)),      # x (per batch)
                pl.BlockSpec((C, 2 * R + 2), lambda b: (0, 0)),     # packed params
                pl.BlockSpec((1, R), lambda b: (0, 0)),             # fc1 bias
            ],
            out_specs=pl.BlockSpec((1, C, HW), lambda b: (b, 0, 0)),
        ),
        compiler_params=pltpu.CompilerParams(
            dimension_semantics=("parallel",),
        ),
    )(x, params, b1)

    return out.reshape(B, C, H, W)


def reference_scse(x, w1, b1, w2, b2, w_spa):
    """Pure-JAX reference mirroring the PyTorch forward (NCHW)."""
    chn = jnp.mean(x, axis=(2, 3))                               # (B, C)   avg_pool(1)
    chn = jnp.maximum(chn @ w1 + b1, 0.0)                        # (B, R)
    chn = jax.nn.sigmoid(chn @ w2.T + b2[:, 0])                  # (B, C)
    chn_se = x * chn[:, :, None, None]
    spa = jax.nn.sigmoid(jnp.einsum("bchw,c->bhw", x, w_spa[:, 0]))
    spa_se = x * spa[:, None, :, :]
    return chn_se + spa_se


if __name__ == "__main__":
    # Module config: SCSEBlock(channel=32, reduction=16) -> hidden R = 32 // 16 = 2
    B, C, H, W = 2, 32, 16, 16
    R = C // 16

    key = jax.random.PRNGKey(0)
    kx, k1, kb1, k2, kb2, ks = jax.random.split(key, 6)

    x = jax.random.normal(kx, (B, C, H, W), dtype=jnp.float32)

    w1 = 0.1 * jax.random.normal(k1, (C, R), dtype=jnp.float32)     # Linear(C,R).weight^T
    b1 = 0.1 * jax.random.normal(kb1, (1, R), dtype=jnp.float32)
    w2 = 0.1 * jax.random.normal(k2, (C, R), dtype=jnp.float32)     # Linear(R,C).weight
    b2 = 0.1 * jax.random.normal(kb2, (C, 1), dtype=jnp.float32)
    w_spa = 0.1 * jax.random.normal(ks, (C, 1), dtype=jnp.float32)  # Conv2d(C,1,1).weight

    out = scse_block(x, w1, b1, w2, b2, w_spa)
    out = jax.block_until_ready(out)

    ref = reference_scse(x, w1, b1, w2, b2, w_spa)
    assert out.shape == (B, C, H, W)
    assert jnp.allclose(out, ref, atol=1e-5, rtol=1e-5), "mismatch vs reference"

    print("KERNEL_OK")
</pallas_src>

<mosaic_0001>
module attributes {stable_mosaic.version = 11 : i64} {
  func.func @scse_kernel(%arg0: i32, %arg1: memref<1x32x256xf32, #tpu.memory_space<vmem>>, %arg2: memref<32x6xf32, #tpu.memory_space<vmem>>, %arg3: memref<1x2xf32, #tpu.memory_space<vmem>>, %arg4: memref<1x32x256xf32, #tpu.memory_space<vmem>>) attributes {dimension_semantics = [#tpu.dimension_semantics<parallel>], iteration_bounds = array<i64: 2>, scalar_prefetch = 0 : i64, scratch_operands = 0 : i64, tpu.core_type = #tpu.core_type<tc>, window_params = [{transform_indices = @transform_0, window_bounds = array<i64: 1, 32, 256>}, {pipeline_mode = #tpu.pipeline_mode<synchronous>, transform_indices = @transform_1, window_bounds = array<i64: 32, 6>}, {pipeline_mode = #tpu.pipeline_mode<synchronous>, transform_indices = @transform_2, window_bounds = array<i64: 1, 2>}, {transform_indices = @transform_3, window_bounds = array<i64: 1, 32, 256>}]} {
    %c0 = arith.constant 0 : index
    %c0_0 = arith.constant 0 : index
    %c0_1 = arith.constant 0 : index
    %0 = vector.load %arg1[%c0, %c0_0, %c0_1] : memref<1x32x256xf32, #tpu.memory_space<vmem>>, vector<1x32x256xf32>
    %1 = vector.shape_cast %0 : vector<1x32x256xf32> to vector<32x256xf32>
    %c0_2 = arith.constant 0 : index
    %c0_3 = arith.constant 0 : index
    %2 = vector.load %arg2[%c0_2, %c0_3] : memref<32x6xf32, #tpu.memory_space<vmem>>, vector<32x6xf32>
    %3 = vector.extract_strided_slice %2 {offsets = [0, 0], sizes = [32, 2], strides = [1, 1]} : vector<32x6xf32> to vector<32x2xf32>
    %4 = vector.extract_strided_slice %2 {offsets = [0, 2], sizes = [32, 2], strides = [1, 1]} : vector<32x6xf32> to vector<32x2xf32>
    %5 = vector.extract_strided_slice %2 {offsets = [0, 4], sizes = [32, 1], strides = [1, 1]} : vector<32x6xf32> to vector<32x1xf32>
    %6 = vector.extract_strided_slice %2 {offsets = [0, 5], sizes = [32, 1], strides = [1, 1]} : vector<32x6xf32> to vector<32x1xf32>
    %cst = arith.constant dense<0.000000e+00> : vector<32xf32>
    %7 = vector.multi_reduction <add>, %1, %cst [1] : vector<32x256xf32> to vector<32xf32>
    %8 = vector.shape_cast %7 : vector<32xf32> to vector<32x1xf32>
    %cst_4 = arith.constant 3.906250e-03 : f32
    %9 = vector.broadcast %cst_4 : f32 to vector<32x1xf32>
    %10 = arith.mulf %8, %9 : vector<32x1xf32>
    %11 = vector.broadcast %10 : vector<32x1xf32> to vector<32x2xf32>
    %12 = arith.mulf %3, %11 : vector<32x2xf32>
    %cst_5 = arith.constant dense<0.000000e+00> : vector<2xf32>
    %13 = vector.multi_reduction <add>, %12, %cst_5 [0] : vector<32x2xf32> to vector<2xf32>
    %14 = vector.shape_cast %13 : vector<2xf32> to vector<1x2xf32>
    %c0_6 = arith.constant 0 : index
    %c0_7 = arith.constant 0 : index
    %15 = vector.load %arg3[%c0_6, %c0_7] : memref<1x2xf32, #tpu.memory_space<vmem>>, vector<1x2xf32>
    %16 = arith.addf %14, %15 : vector<1x2xf32>
    %cst_8 = arith.constant 0.000000e+00 : f32
    %17 = vector.broadcast %cst_8 : f32 to vector<1x2xf32>
    %18 = arith.maximumf %16, %17 : vector<1x2xf32>
    %19 = vector.broadcast %18 : vector<1x2xf32> to vector<32x2xf32>
    %20 = arith.mulf %4, %19 : vector<32x2xf32>
    %cst_9 = arith.constant dense<0.000000e+00> : vector<32xf32>
    %21 = vector.multi_reduction <add>, %20, %cst_9 [1] : vector<32x2xf32> to vector<32xf32>
    %22 = vector.shape_cast %21 : vector<32xf32> to vector<32x1xf32>
    %23 = arith.addf %22, %5 : vector<32x1xf32>
    %24 = arith.negf %23 : vector<32x1xf32>
    %25 = math.exp %24 : vector<32x1xf32>
    %cst_10 = arith.constant 1.000000e+00 : f32
    %26 = vector.broadcast %cst_10 : f32 to vector<32x1xf32>
    %27 = arith.addf %26, %25 : vector<32x1xf32>
    %28 = arith.divf %26, %27 : vector<32x1xf32>
    %29 = vector.broadcast %6 : vector<32x1xf32> to vector<32x256xf32>
    %30 = arith.mulf %1, %29 : vector<32x256xf32>
    %cst_11 = arith.constant dense<0.000000e+00> : vector<256xf32>
    %31 = vector.multi_reduction <add>, %30, %cst_11 [0] : vector<32x256xf32> to vector<256xf32>
    %32 = vector.shape_cast %31 : vector<256xf32> to vector<1x256xf32>
    %33 = arith.negf %32 : vector<1x256xf32>
    %34 = math.exp %33 : vector<1x256xf32>
    %cst_12 = arith.constant 1.000000e+00 : f32
    %35 = vector.broadcast %cst_12 : f32 to vector<1x256xf32>
    %36 = arith.addf %35, %34 : vector<1x256xf32>
    %37 = arith.divf %35, %36 : vector<1x256xf32>
    %38 = vector.broadcast %28 : vector<32x1xf32> to vector<32x256xf32>
    %39 = vector.broadcast %37 : vector<1x256xf32> to vector<32x256xf32>
    %40 = arith.addf %38, %39 : vector<32x256xf32>
    %41 = arith.mulf %1, %40 : vector<32x256xf32>
    %c0_13 = arith.constant 0 : index
    %c0_14 = arith.constant 0 : index
    %c0_15 = arith.constant 0 : index
    %42 = vector.load %arg4[%c0_13, %c0_14, %c0_15] : memref<1x32x256xf32, #tpu.memory_space<vmem>>, vector<1x32x256xf32>
    %43 = vector.shape_cast %42 : vector<1x32x256xf32> to vector<32x256xf32>
    %44 = vector.shape_cast %41 : vector<32x256xf32> to vector<1x32x256xf32>
    tpu.vector_store %arg4[%c0_13, %c0_14, %c0_15], %44 {strides = array<i32>} : memref<1x32x256xf32, #tpu.memory_space<vmem>>, vector<1x32x256xf32>,
    return
  }
  func.func @transform_0(%arg0: i32) -> (i32, i32, i32) {
    %c0_i32 = arith.constant 0 : i32
    %c0_i32_0 = arith.constant 0 : i32
    %c0_i32_1 = arith.constant 0 : i32
    return %arg0, %c0_i32, %c0_i32_0 : i32, i32, i32
  }
  func.func @transform_1(%arg0: i32) -> (i32, i32) {
    %c0_i32 = arith.constant 0 : i32
    %c0_i32_0 = arith.constant 0 : i32
    %c0_i32_1 = arith.constant 0 : i32
    return %c0_i32, %c0_i32_0 : i32, i32
  }
  func.func @transform_2(%arg0: i32) -> (i32, i32) {
    %c0_i32 = arith.constant 0 : i32
    %c0_i32_0 = arith.constant 0 : i32
    %c0_i32_1 = arith.constant 0 : i32
    return %c0_i32, %c0_i32_0 : i32, i32
  }
  func.func @transform_3(%arg0: i32) -> (i32, i32, i32) {
    %c0_i32 = arith.constant 0 : i32
    %c0_i32_0 = arith.constant 0 : i32
    %c0_i32_1 = arith.constant 0 : i32
    return %arg0, %c0_i32, %c0_i32_0 : i32, i32, i32
  }
}

</mosaic_0001>

<llo_original>
// kernel: tpu_custom_call.1
$region0: #{tpu_custom_call.1}
  #allocation0 [shape = 'u32[]', space=smem, size = 0x4, offset = 0x4, fixed_abs, tag = 'smem constant byte address 0x4 - core index']
  #allocation1 [shape = 'u32[72,128]{1,0:T(1,128)}', space=vmem, size = 0x9000, scoped, tag = 'internal scratch']
  %s0 = inlined_call_operand.hbm [shape: f32[2,32,256], index: 0, kind: input, shape index: {}]
  %s1 = inlined_call_operand.vmem [shape: f32[32,6], index: 1, kind: input, shape index: {}]
  %s2 = inlined_call_operand.vmem [shape: f32[1,2], index: 2, kind: input, shape index: {}]
  %s3 = inlined_call_operand.hbm [shape: f32[2,32,256], index: 3, kind: output, shape index: {}]
  %s4 = sld [smem:[#allocation0]]
  $region49: #{tpu_custom_call.1} parent=0
    _
  %s6 = ssub.s32 1, %s4
  %s7 = scalar_select 0, %s6, %s4
  $region1: #{tpu_custom_call.1} parent=0
    #allocation2 [shape = 'u8[65536]{0}', space=vmem, size = 0x10000, scoped, tag = 'input window, operand 0']
    #allocation3 [shape = 's32[2]{0}', space=sflag, size = 0x8, scoped, tag = 'scoped memory for tpu_custom_call.1']
    #allocation4 [shape = 's32[2]{0}', space=sflag, size = 0x8, scoped, tag = 'scoped memory for tpu_custom_call.1']
    #allocation5 [shape = 'u8[65536]{0}', space=vmem, size = 0x10000, scoped, tag = 'output window, operand 0']
    %8 = vsyncpa [#allocation3], 0
    %s9 = scalar_lea.sflag [#allocation3], 1
    %10 = vsyncpa %s9, 0
    %11 = vsyncpa [#allocation4], 0
    %s12 = scalar_lea.sflag [#allocation4], 1
    %13 = vsyncpa %s12, 0
    loop: start=0, step=1, limit=4
    $region2: #{tpu_custom_call.1} parent=1 // loop_pre_header
      _
    $region3: #{tpu_custom_call.1} parent=1 // loop_header
      %s15 = sphi 0, %s19
      %p16 = scmp.ge.s32.totalorder %s15, 4
      %s25 = sphi 0, %s27
      %s28 = sphi 0, %s25
      %s29 = sphi 0, %s28
      %s45 = sphi 0, %s29
      %s49 = sphi 0, %s49
      %s51 = sphi 0, %s49
      %s52 = sphi 0, %s51
      %s66 = sphi 0, %s52
      %s70 = sphi 0, %s70
      %s72 = sphi 0, %s70
      %s73 = sphi 0, %s72
      %s87 = sphi 0, %s73
      %s93 = sphi 0, %s95
      %s96 = sphi 0, %s93
      %s97 = sphi 0, %s96
      %s113 = sphi 0, %s97
    $region4: #{tpu_custom_call.1} parent=1 // loop_header_branch
      %18 = sbr.rel (%p16) target = $region8
    $region5: #{tpu_custom_call.1} parent=1 // loop_body
      %s20 = ssub.s32 %s15, 1
      %s21 = ssub.s32 %s15, 2
      %s22 = sadd.s32 %s15, 1
      %s23 = ssub.s32 %s15, %s22
      %p24 = scmp.eq.s32.totalorder %s23, 0
      %s26 = sadd.s32 %s25, 1
      %s27 = scalar_select %p24, %s25, %s26
      %p30 = pneg %p24
      %p31 = scmp.eq.s32.totalorder %s15, 1
      %p32 = por %p30, %p31
      %p33 = scmp.ne.s32.totalorder %s25, %s28
      %p34 = scmp.eq.s32.totalorder %s15, 0
      %p35 = por %p33, %p34
      %p36 = scmp.ne.s32.totalorder %s25, %s28
      %p37 = scmp.eq.s32.totalorder %s20, 1
      %p38 = por %p36, %p37
      %p39 = scmp.ne.s32.totalorder %s28, %s29
      %p40 = scmp.eq.s32.totalorder %s20, 0
      %p41 = por %p39, %p40
      %p42 = scmp.ne.s32.totalorder %s28, %s29
      %p43 = scmp.eq.s32.totalorder %s21, 1
      %p44 = por %p42, %p43
      %p46 = scmp.ne.s32.totalorder %s29, %s45
      %p47 = scmp.eq.s32.totalorder %s21, 0
      %p48 = por %p46, %p47
      %s50 = sadd.s32 %s49, 1
      %p53 = scmp.eq.s32.totalorder %s15, 1
      %p54 = scmp.ne.s32.totalorder %s49, %s51
      %p55 = scmp.eq.s32.totalorder %s15, 0
      %p56 = por %p54, %p55
      %p57 = scmp.ne.s32.totalorder %s49, %s51
      %p58 = scmp.eq.s32.totalorder %s20, 1
      %p59 = por %p57, %p58
      %p60 = scmp.ne.s32.totalorder %s51, %s52
      %p61 = scmp.eq.s32.totalorder %s20, 0
      %p62 = por %p60, %p61
      %p63 = scmp.ne.s32.totalorder %s51, %s52
      %p64 = scmp.eq.s32.totalorder %s21, 1
      %p65 = por %p63, %p64
      %p67 = scmp.ne.s32.totalorder %s52, %s66
      %p68 = scmp.eq.s32.totalorder %s21, 0
      %p69 = por %p67, %p68
      %s71 = sadd.s32 %s70, 1
      %p74 = scmp.eq.s32.totalorder %s15, 1
      %p75 = scmp.ne.s32.totalorder %s70, %s72
      %p76 = scmp.eq.s32.totalorder %s15, 0
      %p77 = por %p75, %p76
      %p78 = scmp.ne.s32.totalorder %s70, %s72
      %p79 = scmp.eq.s32.totalorder %s20, 1
      %p80 = por %p78, %p79
      %p81 = scmp.ne.s32.totalorder %s72, %s73
      %p82 = scmp.eq.s32.totalorder %s20, 0
      %p83 = por %p81, %p82
      %p84 = scmp.ne.s32.totalorder %s72, %s73
      %p85 = scmp.eq.s32.totalorder %s21, 1
      %p86 = por %p84, %p85
      %p88 = scmp.ne.s32.totalorder %s73, %s87
      %p89 = scmp.eq.s32.totalorder %s21, 0
      %p90 = por %p88, %p89
      %s91 = ssub.s32 %s15, %s22
      %p92 = scmp.eq.s32.totalorder %s91, 0
      %s94 = sadd.s32 %s93, 1
      %s95 = scalar_select %p92, %s93, %s94
      %p98 = pneg %p92
      %p99 = scmp.eq.s32.totalorder %s15, 1
      %p100 = por %p98, %p99
      %p101 = scmp.ne.s32.totalorder %s93, %s96
      %p102 = scmp.eq.s32.totalorder %s15, 0
      %p103 = por %p101, %p102
      %p104 = scmp.ne.s32.totalorder %s93, %s96
      %p105 = scmp.eq.s32.totalorder %s20, 1
      %p106 = por %p104, %p105
      %p107 = scmp.ne.s32.totalorder %s96, %s97
      %p108 = scmp.eq.s32.totalorder %s20, 0
      %p109 = por %p107, %p108
      %p110 = scmp.ne.s32.totalorder %s96, %s97
      %p111 = scmp.eq.s32.totalorder %s21, 1
      %p112 = por %p110, %p111
      %p114 = scmp.ne.s32.totalorder %s97, %s113
      %p115 = scmp.eq.s32.totalorder %s21, 0
      %p116 = por %p114, %p115
      %p117 = scmp.le.s32.totalorder 1, %s15
      %p118 = scmp.lt.s32.totalorder %s15, 3
      %p119 = pnand %p117, %p118
      %p120 = pneg %p119
      // Predicated region
      $region9: #{tpu_custom_call.1} parent=5 // pred_check
        _
      $region10: #{tpu_custom_call.1} parent=5 // pred_check_branch
        %122 = sbr.rel (%p119) target = $region12
      $region11: #{tpu_custom_call.1} parent=5 // pred_region
        %s123 = ssub.s32 %s15, 1
        // Predicated region
        $region13: #{tpu_custom_call.1} parent=11 // pred_check
          %p124 = pneg %p62
        $region14: #{tpu_custom_call.1} parent=11 // pred_check_branch
          %126 = sbr.rel (%p124) target = $region16
        $region15: #{tpu_custom_call.1} parent=11 // pred_region
          _
        $region16: #{tpu_custom_call.1} parent=11 // pred_fallthru
          _
        // Predicated region
        $region17: #{tpu_custom_call.1} parent=11 // pred_check
          %p127 = pneg %p83
        $region18: #{tpu_custom_call.1} parent=11 // pred_check_branch
          %129 = sbr.rel (%p127) target = $region20
        $region19: #{tpu_custom_call.1} parent=11 // pred_region
          _
        $region20: #{tpu_custom_call.1} parent=11 // pred_fallthru
          _
      $region12: #{tpu_custom_call.1} parent=5 // pred_fallthru
        _
      %p130 = scmp.lt.s32.totalorder %s15, 2
      // Predicated region
      $region21: #{tpu_custom_call.1} parent=5 // pred_check
        %p131 = pneg %p130
      $region22: #{tpu_custom_call.1} parent=5 // pred_check_branch
        %133 = sbr.rel (%p131) target = $region24
      $region23: #{tpu_custom_call.1} parent=5 // pred_region
        // Predicated region
        $region25: #{tpu_custom_call.1} parent=23 // pred_check
          %p134 = pneg %p35
        $region26: #{tpu_custom_call.1} parent=23 // pred_check_branch
          %136 = sbr.rel (%p134) target = $region28
        $region27: #{tpu_custom_call.1} parent=23 // pred_region
          %s137 = sand.u32 %s25, 1
          %s138 = scalar_lea.sflag [#allocation3], %s137
          %s139 = sand.u32 %s25, 1
          %s140 = smul.addr %s139, 64
          %s141 = scalar_lea.vmem [#allocation2], %s140
          %143 = vsyncadd %s138, 0
          %s144 = smul.addr %s15, 8
          %s145 = smul.addr %s144, 8
          %s146 = scalar_lea.hbm %s0, %s145
          %s147 = sshll.u32 %s146, 4
          %s148 = int_to_ptr.hbm [resolvable:$true] %s147
          %s149 = sshll.u32 %s141, 4
          %s150 = int_to_ptr.vmem [resolvable:$true] %s149
          %155 = dma.hbm_to_vmem [thread:$0]  %s148, 1024, %s150, %s138, 256, 256, 16
        $region28: #{tpu_custom_call.1} parent=23 // pred_fallthru
          _
      $region24: #{tpu_custom_call.1} parent=5 // pred_fallthru
        _
      %p156 = scmp.le.s32.totalorder 1, %s15
      %p157 = scmp.lt.s32.totalorder %s15, 3
      %p158 = pnand %p156, %p157
      %p159 = pneg %p158
      // Predicated region
      $region29: #{tpu_custom_call.1} parent=5 // pred_check
        _
      $region30: #{tpu_custom_call.1} parent=5 // pred_check_branch
        %161 = sbr.rel (%p158) target = $region32
      $region31: #{tpu_custom_call.1} parent=5 // pred_region
        %s162 = ssub.s32 %s15, 1
        %s163 = sand.u32 %s28, 1
        %s164 = scalar_lea.sflag [#allocation3], %s163
        %s165 = sand.u32 %s28, 1
        %s166 = smul.addr %s165, 64
        %s167 = scalar_lea.vmem [#allocation2], %s166
        // Predicated region
        $region33: #{tpu_custom_call.1} parent=31 // pred_check
          %p168 = pneg %p41
        $region34: #{tpu_custom_call.1} parent=31 // pred_check_branch
          %170 = sbr.rel (%p168) target = $region36
        $region35: #{tpu_custom_call.1} parent=31 // pred_region
          %172 = dma.done %s164, 1024
        $region36: #{tpu_custom_call.1} parent=31 // pred_fallthru
          _
        %s173 = sand.u32 %s28, 1
        %s174 = scalar_lea.sflag [#allocation3], %s173
        %s175 = sand.u32 %s28, 1
        %s176 = smul.addr %s175, 64
        %s177 = scalar_lea.vmem [#allocation2], %s176
        %p178 = pneg %p41
        %p179 = pneg %p38
        %p180 = pneg %p62
        %p181 = pneg %p59
        %p182 = pneg %p83
        %p183 = pneg %p80
        %p184 = pneg %p109
        %p185 = pneg %p106
        %s186 = sand.u32 %s96, 1
        %s187 = scalar_lea.sflag [#allocation4], %s186
        %s188 = sand.u32 %s96, 1
        %s189 = smul.addr %s188, 64
        %s190 = scalar_lea.vmem [#allocation5], %s189
        %v191 = vld [vmem:[%s167] sm:$0xff]
        %v192 = vld [vmem:[%s167 + $0x8] sm:$0xff]
        %v193 = vld [vmem:[%s167 + $0x10] sm:$0xff]
        %v194 = vld [vmem:[%s167 + $0x18] sm:$0xff]
        %v195 = vld [vmem:[%s167 + $0x20] sm:$0xff]
        %v196 = vld [vmem:[%s167 + $0x28] sm:$0xff]
        %v197 = vld [vmem:[%s167 + $0x30] sm:$0xff]
        %v198 = vld [vmem:[%s167 + $0x38] sm:$0xff]
        %v199 = vld [vmem:[%s1] sm:$0xff]
        %v200 = vld [vmem:[%s1 + $0x8] sm:$0xff]
        %v201 = vld [vmem:[%s1 + $0x10] sm:$0xff]
        %v202 = vld [vmem:[%s1 + $0x18] sm:$0xff]
        %v203 = vadd.f32 %v191, %v192
        %204 = vadd.xlane.f32.xlu0 %v203
        %v205 = vpop.xlane.xlu0 %204
        %v206 = vadd.f32 %v193, %v194
        %207 = vadd.xlane.f32.xlu0 %v206
        %v208 = vpop.xlane.xlu0 %207
        %v209 = vadd.f32 %v195, %v196
        %210 = vadd.xlane.f32.xlu0 %v209
        %v211 = vpop.xlane.xlu0 %210
        %v212 = vadd.f32 %v197, %v198
        %213 = vadd.xlane.f32.xlu0 %v212
        %v214 = vpop.xlane.xlu0 %213
        %v215 = vmul.f32 %v205, 0.00390625
        %v216 = vmul.f32 %v208, 0.00390625
        %v217 = vmul.f32 %v211, 0.00390625
        %v218 = vmul.f32 %v214, 0.00390625
        %v219 = vmul.f32 %v199, %v215
        %v220 = vmul.f32 %v200, %v216
        %v221 = vmul.f32 %v201, %v217
        %v222 = vmul.f32 %v202, %v218
        %vm223 = vcmask 15360
        %v224 = vsel %vm223, %v219, 0.0
        %v225 = vsel %vm223, %v220, 0.0
        %v226 = vadd.f32 %v224, %v225
        %v227 = vsel %vm223, %v221, 0.0
        %v228 = vadd.f32 %v226, %v227
        %v229 = vsel %vm223, %v222, 0.0
        %v230 = vadd.f32 %v228, %v229
        %v231 = vrot.slane %v230, 4
        %v232 = vadd.f32 %v230, %v231
        %v233 = vrot.slane %v232, 2
        %v234 = vadd.f32 %v232, %v233
        %v235 = vrot.slane %v234, 1
        %v236 = vadd.f32 %v234, %v235
        %v237 = vld [vmem:[%s2] sm:$0x1]
        %v238 = vadd.f32 %v236, %v237
        %v239 = vmax.f32 %v238, 0.0
        %v240 = vperm.slane %v239, 0
        %242 = vrot.lane.b32.xlu0 %v240, 2
        %v243 = vpop.permute.xlu0 %242
        %v245 = vmul.f32 %v199, %v243
        %v246 = vmul.f32 %v200, %v243
        %v247 = vmul.f32 %v201, %v243
        %v248 = vmul.f32 %v202, %v243
        %253 = vrot.lane.b32.xlu0 %v245, 126
        %v254 = vpop.permute.xlu0 %253
        %255 = vrot.lane.b32.xlu0 %v246, 126
        %v256 = vpop.permute.xlu0 %255
        %257 = vrot.lane.b32.xlu0 %v247, 126
        %v258 = vpop.permute.xlu0 %257
        %259 = vrot.lane.b32.xlu0 %v248, 126
        %v260 = vpop.permute.xlu0 %259
        %v265 = vsel %vm223, %v254, 0.0
        %266 = vadd.xlane.f32.xlu0 %v265
        %v267 = vpop.xlane.xlu0 %266
        %v268 = vsel %vm223, %v256, 0.0
        %269 = vadd.xlane.f32.xlu0 %v268
        %v270 = vpop.xlane.xlu0 %269
        %v271 = vsel %vm223, %v258, 0.0
        %272 = vadd.xlane.f32.xlu0 %v271
        %v273 = vpop.xlane.xlu0 %272
        %v274 = vsel %vm223, %v260, 0.0
        %275 = vadd.xlane.f32.xlu0 %v274
        %v276 = vpop.xlane.xlu0 %275
        %v277 = vadd.f32 %v267, %v199
        %v278 = vadd.f32 %v270, %v200
        %v279 = vadd.f32 %v273, %v201
        %v280 = vadd.f32 %v276, %v202
        %v281 = vxor.u32 %v277, 2147483648
        %v282 = vxor.u32 %v278, 2147483648
        %v283 = vxor.u32 %v279, 2147483648
        %v284 = vxor.u32 %v280, 2147483648
        %v285 = vmul.f32 %v281, 1.442695
        %v286 = vpow.pop %v285
        %v287 = vmul.f32 %v282, 1.442695
        %v288 = vpow.pop %v287
        %v289 = vmul.f32 %v283, 1.442695
        %v290 = vpow.pop %v289
        %v291 = vmul.f32 %v284, 1.442695
        %v292 = vpow.pop %v291
        %v293 = vadd.f32 %v286, 1.0
        %v294 = vadd.f32 %v288, 1.0
        %v295 = vadd.f32 %v290, 1.0
        %v296 = vadd.f32 %v292, 1.0
        %v297 = vrcp.pop %v293
        %v298 = vmul.f32 %v293, %v297
        %v299 = vsub.f32 1.0, %v298
        %v300 = vmul.f32 %v297, %v299
        %v301 = vadd.f32 %v297, %v300
        %vm302 = vweird.f32 %v293
        %vm303 = vweird.f32 %v297
        %vm304 = vmor %vm302, %vm303
        %v305 = vsel %vm304, %v297, %v301
        %v306 = vand.u32 2147483647, %v293
        %vm307 = vcmp.eq.f32.partialorder %v306, 8.507059e+37
        %v308 = vand.u32 %v293, 2147483648
        %v309 = vor.u32 1.1754944e-38, %v308
        %v310 = vsel %vm307, %v309, %v305
        %v311 = vmul.f32 1.0, %v310
        %v312 = vrcp.pop %v294
        %v313 = vmul.f32 %v294, %v312
        %v314 = vsub.f32 1.0, %v313
        %v315 = vmul.f32 %v312, %v314
        %v316 = vadd.f32 %v312, %v315
        %vm317 = vweird.f32 %v294
        %vm318 = vweird.f32 %v312
        %vm319 = vmor %vm317, %vm318
        %v320 = vsel %vm319, %v312, %v316
        %v321 = vand.u32 2147483647, %v294
        %vm322 = vcmp.eq.f32.partialorder %v321, 8.507059e+37
        %v323 = vand.u32 %v294, 2147483648
        %v324 = vor.u32 1.1754944e-38, %v323
        %v325 = vsel %vm322, %v324, %v320
        %v326 = vmul.f32 1.0, %v325
        %v327 = vrcp.pop %v295
        %v328 = vmul.f32 %v295, %v327
        %v329 = vsub.f32 1.0, %v328
        %v330 = vmul.f32 %v327, %v329
        %v331 = vadd.f32 %v327, %v330
        %vm332 = vweird.f32 %v295
        %vm333 = vweird.f32 %v327
        %vm334 = vmor %vm332, %vm333
        %v335 = vsel %vm334, %v327, %v331
        %v336 = vand.u32 2147483647, %v295
        %vm337 = vcmp.eq.f32.partialorder %v336, 8.507059e+37
        %v338 = vand.u32 %v295, 2147483648
        %v339 = vor.u32 1.1754944e-38, %v338
        %v340 = vsel %vm337, %v339, %v335
        %v341 = vmul.f32 1.0, %v340
        %v342 = vrcp.pop %v296
        %v343 = vmul.f32 %v296, %v342
        %v344 = vsub.f32 1.0, %v343
        %v345 = vmul.f32 %v342, %v344
        %v346 = vadd.f32 %v342, %v345
        %vm347 = vweird.f32 %v296
        %vm348 = vweird.f32 %v342
        %vm349 = vmor %vm347, %vm348
        %v350 = vsel %vm349, %v342, %v346
        %v351 = vand.u32 2147483647, %v296
        %vm352 = vcmp.eq.f32.partialorder %v351, 8.507059e+37
        %v353 = vand.u32 %v296, 2147483648
        %v354 = vor.u32 1.1754944e-38, %v353
        %v355 = vsel %vm352, %v354, %v350
        %v356 = vmul.f32 1.0, %v355
        %358 = vset.pattern.permute.xlu0 5
        %359 = vperm.xlu0 %358, %v199
        %v360 = vpop.permute.xlu0 %359
        %363 = vset.pattern.permute.xlu0 5
        %364 = vperm.xlu0 %363, %v200
        %v365 = vpop.permute.xlu0 %364
        %368 = vset.pattern.permute.xlu0 5
        %369 = vperm.xlu0 %368, %v201
        %v370 = vpop.permute.xlu0 %369
        %373 = vset.pattern.permute.xlu0 5
        %374 = vperm.xlu0 %373, %v202
        %v375 = vpop.permute.xlu0 %374
        %v377 = vmul.f32 %v191, %v360
        %v378 = vmul.f32 %v192, %v360
        %v379 = vmul.f32 %v193, %v365
        %v380 = vmul.f32 %v194, %v365
        %v381 = vmul.f32 %v195, %v370
        %v382 = vmul.f32 %v196, %v370
        %v383 = vmul.f32 %v197, %v375
        %v384 = vmul.f32 %v198, %v375
        %v385 = vadd.f32 %v377, %v379
        %v386 = vadd.f32 %v385, %v381
        %v387 = vadd.f32 %v386, %v383
        %v388 = vrot.slane %v387, 4
        %v389 = vadd.f32 %v387, %v388
        %v390 = vrot.slane %v389, 2
        %v391 = vadd.f32 %v389, %v390
        %v392 = vrot.slane %v391, 1
        %v393 = vadd.f32 %v391, %v392
        %v394 = vadd.f32 %v378, %v380
        %v395 = vadd.f32 %v394, %v382
        %v396 = vadd.f32 %v395, %v384
        %v397 = vrot.slane %v396, 4
        %v398 = vadd.f32 %v396, %v397
        %v399 = vrot.slane %v398, 2
        %v400 = vadd.f32 %v398, %v399
        %v401 = vrot.slane %v400, 1
        %v402 = vadd.f32 %v400, %v401
        %v403 = vxor.u32 %v393, 2147483648
        %v404 = vxor.u32 %v402, 2147483648
        %v405 = vmul.f32 %v403, 1.442695
        %v406 = vpow.pop %v405
        %v407 = vmul.f32 %v404, 1.442695
        %v408 = vpow.pop %v407
        %v409 = vadd.f32 %v406, 1.0
        %v410 = vadd.f32 %v408, 1.0
        %v411 = vrcp.pop %v409
        %v412 = vmul.f32 %v409, %v411
        %v413 = vsub.f32 1.0, %v412
        %v414 = vmul.f32 %v411, %v413
        %v415 = vadd.f32 %v411, %v414
        %vm416 = vweird.f32 %v409
        %vm417 = vweird.f32 %v411
        %vm418 = vmor %vm416, %vm417
        %v419 = vsel %vm418, %v411, %v415
        %v420 = vand.u32 2147483647, %v409
        %vm421 = vcmp.eq.f32.partialorder %v420, 8.507059e+37
        %v422 = vand.u32 %v409, 2147483648
        %v423 = vor.u32 1.1754944e-38, %v422
        %v424 = vsel %vm421, %v423, %v419
        %v425 = vmul.f32 1.0, %v424
        %v426 = vrcp.pop %v410
        %v427 = vmul.f32 %v410, %v426
        %v428 = vsub.f32 1.0, %v427
        %v429 = vmul.f32 %v426, %v428
        %v430 = vadd.f32 %v426, %v429
        %vm431 = vweird.f32 %v410
        %vm432 = vweird.f32 %v426
        %vm433 = vmor %vm431, %vm432
        %v434 = vsel %vm433, %v426, %v430
        %v435 = vand.u32 2147483647, %v410
        %vm436 = vcmp.eq.f32.partialorder %v435, 8.507059e+37
        %v437 = vand.u32 %v410, 2147483648
        %v438 = vor.u32 1.1754944e-38, %v437
        %v439 = vsel %vm436, %v438, %v434
        %v440 = vmul.f32 1.0, %v439
        %442 = vset.pattern.permute.xlu0 4
        %443 = vperm.xlu0 %442, %v311
        %v444 = vpop.permute.xlu0 %443
        %447 = vset.pattern.permute.xlu0 4
        %448 = vperm.xlu0 %447, %v326
        %v449 = vpop.permute.xlu0 %448
        %452 = vset.pattern.permute.xlu0 4
        %453 = vperm.xlu0 %452, %v341
        %v454 = vpop.permute.xlu0 %453
        %457 = vset.pattern.permute.xlu0 4
        %458 = vperm.xlu0 %457, %v356
        %v459 = vpop.permute.xlu0 %458
        %v461 = vadd.f32 %v444, %v425
        %v462 = vadd.f32 %v444, %v440
        %v463 = vadd.f32 %v449, %v425
        %v464 = vadd.f32 %v449, %v440
        %v465 = vadd.f32 %v454, %v425
        %v466 = vadd.f32 %v454, %v440
        %v467 = vadd.f32 %v459, %v425
        %v468 = vadd.f32 %v459, %v440
        %v469 = vmul.f32 %v191, %v461
        %v470 = vmul.f32 %v192, %v462
        %v471 = vmul.f32 %v193, %v463
        %v472 = vmul.f32 %v194, %v464
        %v473 = vmul.f32 %v195, %v465
        %v474 = vmul.f32 %v196, %v466
        %v475 = vmul.f32 %v197, %v467
        %v476 = vmul.f32 %v198, %v468
        %477 = vst [vmem:[%s190] sm:$0xff] %v469
        %478 = vst [vmem:[%s190 + $0x8] sm:$0xff] %v470
        %479 = vst [vmem:[%s190 + $0x10] sm:$0xff] %v471
        %480 = vst [vmem:[%s190 + $0x18] sm:$0xff] %v472
        %481 = vst [vmem:[%s190 + $0x20] sm:$0xff] %v473
        %482 = vst [vmem:[%s190 + $0x28] sm:$0xff] %v474
        %483 = vst [vmem:[%s190 + $0x30] sm:$0xff] %v475
        %484 = vst [vmem:[%s190 + $0x38] sm:$0xff] %v476
        %s485 = sand.u32 %s96, 1
        %s486 = scalar_lea.sflag [#allocation4], %s485
        %s487 = sand.u32 %s96, 1
        %s488 = smul.addr %s487, 64
        %s489 = scalar_lea.vmem [#allocation5], %s488
        // Predicated region
        $region37: #{tpu_custom_call.1} parent=31 // pred_check
          %p490 = pneg %p106
        $region38: #{tpu_custom_call.1} parent=31 // pred_check_branch
          %492 = sbr.rel (%p490) target = $region40
        $region39: #{tpu_custom_call.1} parent=31 // pred_region
          %494 = vsyncadd %s486, 0
          %s495 = smul.addr %s20, 8
          %s496 = smul.addr %s495, 8
          %s497 = scalar_lea.hbm %s3, %s496
          %s498 = sshll.u32 %s489, 4
          %s499 = int_to_ptr.vmem [resolvable:$true] %s498
          %s500 = sshll.u32 %s497, 4
          %s501 = int_to_ptr.hbm [resolvable:$true] %s500
          %506 = dma.vmem_to_hbm [thread:$0]  %s499, 1024, %s501, %s486, 256, 256, 16
        $region40: #{tpu_custom_call.1} parent=31 // pred_fallthru
          _
      $region32: #{tpu_custom_call.1} parent=5 // pred_fallthru
        _
      %p507 = scmp.le.s32.totalorder 2, %s15
      // Predicated region
      $region41: #{tpu_custom_call.1} parent=5 // pred_check
        %p508 = pneg %p507
      $region42: #{tpu_custom_call.1} parent=5 // pred_check_branch
        %510 = sbr.rel (%p508) target = $region44
      $region43: #{tpu_custom_call.1} parent=5 // pred_region
        %s511 = ssub.s32 %s15, 2
        // Predicated region
        $region45: #{tpu_custom_call.1} parent=43 // pred_check
          %p512 = pneg %p112
        $region46: #{tpu_custom_call.1} parent=43 // pred_check_branch
          %514 = sbr.rel (%p512) target = $region48
        $region47: #{tpu_custom_call.1} parent=43 // pred_region
          %s515 = sand.u32 %s97, 1
          %s516 = scalar_lea.sflag [#allocation4], %s515
          %s517 = sand.u32 %s97, 1
          %s518 = smul.addr %s517, 64
          %s519 = scalar_lea.vmem [#allocation5], %s518
          %521 = dma.done %s516, 1024
        $region48: #{tpu_custom_call.1} parent=43 // pred_fallthru
          _
      $region44: #{tpu_custom_call.1} parent=5 // pred_fallthru
        _
    $region6: #{tpu_custom_call.1} parent=1 // loop_footer
      %s19 = sadd.s32 1, %s15
    $region7: #{tpu_custom_call.1} parent=1 // loop_footer_branch
      %14 = sbr.rel target = $region3
    $region8: #{tpu_custom_call.1} parent=1 // loop_exit
      _
    %522 = vsyncpa [#allocation3], 1
    %s523 = scalar_lea.sflag [#allocation3], 1
    %524 = vsyncpa %s523, 1
    %525 = vsyncpa [#allocation4], 1
    %s526 = scalar_lea.sflag [#allocation4], 1
    %527 = vsyncpa %s526, 1

</llo_original>
